<compile_context>
chip_gen: v6e
topology: v6e:2x2x1
jax: 0.10.0
libtpu: 0.0.40
codegen_flags: <defaults>
</compile_context>

<pallas_src>
import jax
import jax.numpy as jnp
from jax.experimental import pallas as pl
from jax.experimental.pallas import tpu as pltpu


def attention_kernel(enc_ref, dec_ref, w_dec_ref, w_attn_ref, b_ref, out_ref):
    enc = enc_ref[...]            # (Bt, S, D)
    dec = dec_ref[...]            # (Bt, D)

    # attn_score[b, s] = sum_d enc[b, s, d] * dec[b, d]
    # (batched contraction over D; elementwise multiply + lane reduce — the contraction
    #  is inherently batched, so it cannot be expressed as one plain MXU matmul)
    score = jnp.sum(enc * dec[:, None, :], axis=-1)          # (Bt, S)

    # softmax over the sequence axis (torch dim=1)
    m = jnp.max(score, axis=-1, keepdims=True)
    p = jnp.exp(score - m)
    denom = jnp.sum(p, axis=-1, keepdims=True)
    attn = p / denom                                          # (Bt, S)

    # attn_value[b, d] = sum_s attn[b, s] * enc[b, s, d]
    attn_value = jnp.sum(attn[:, :, None] * enc, axis=1)      # (Bt, D)

    # relu(tanh(.)) elementwise; concat elided by splitting the fc weight
    h_dec = jnp.maximum(jnp.tanh(dec), 0.0)                   # (Bt, D)
    h_attn = jnp.maximum(jnp.tanh(attn_value), 0.0)           # (Bt, D)
    # TODO(synk): nn.Dropout is identity here (eval-mode); no RNG masking applied.

    # fc: two (Bt, D) @ (D, O) MXU matmuls accumulate the split weight halves + bias
    y = (jnp.dot(h_dec, w_dec_ref[...], preferred_element_type=jnp.float32)
         + jnp.dot(h_attn, w_attn_ref[...], preferred_element_type=jnp.float32)
         + b_ref[...])                                        # (Bt, O)

    # log_softmax over the output dim (torch dim=1)
    ym = jnp.max(y, axis=-1, keepdims=True)
    z = y - ym
    lse = jnp.log(jnp.sum(jnp.exp(z), axis=-1, keepdims=True))
    out_ref[...] = z - lse


def _pick_batch_tile(B, S, D):
    """Batch tile: multiple of 8, VMEM-capped (v7x), <=256 (MXU rows), >=2 steps if easy."""
    vmem_budget = 8 << 20                                   # double-buffered enc tile budget
    max_bt = max(8, vmem_budget // (2 * S * D * 4))
    max_bt = min(max_bt, 256)                               # 256 MXU rows (v6e/v7x); 2x128 on v5e
    if B <= max_bt:
        half = B // 2
        if B % 2 == 0 and half >= 8 and half % 8 == 0:
            return half                                     # >= 2 grid steps for v7x megacore
        return B                                            # full-extent block (always legal)
    bt = max_bt - (max_bt % 8)
    return max(8, bt)


def attention_forward(encoder_hiddens, decoder_end_state, fc_w, fc_b):
    B, S, D = encoder_hiddens.shape
    two_d, O = fc_w.shape
    assert two_d == 2 * D

    dec2d = decoder_end_state.reshape(B, D)                 # torch .squeeze(2)
    w_dec = fc_w[:D]                                        # rows matching decoder half of the cat
    w_attn = fc_w[D:]                                       # rows matching attention half

    Bt = _pick_batch_tile(B, S, D)
    grid = (pl.cdiv(B, Bt),)

    return pl.pallas_call(
        attention_kernel,
        out_shape=jax.ShapeDtypeStruct((B, O), jnp.float32),
        grid=grid,
        in_specs=[
            pl.BlockSpec((Bt, S, D), lambda b: (b, 0, 0)),   # encoder hiddens: batch tile
            pl.BlockSpec((Bt, D), lambda b: (b, 0)),         # decoder end state: batch tile
            pl.BlockSpec((D, O), lambda b: (0, 0)),          # fc weight (decoder half), resident
            pl.BlockSpec((D, O), lambda b: (0, 0)),          # fc weight (attention half), resident
            pl.BlockSpec((1, O), lambda b: (0, 0)),          # fc bias, resident
        ],
        out_specs=pl.BlockSpec((Bt, O), lambda b: (b, 0)),
        compiler_params=pltpu.CompilerParams(
            dimension_semantics=("parallel",),
        ),
    )(encoder_hiddens, dec2d, w_dec, w_attn, fc_b)


def reference(enc, dec, w, b):
    # Pure-JAX replica of the torch forward (eval mode).
    score = jnp.einsum("bsd,bdo->bso", enc, dec)                    # (B,S,1)
    attn = jax.nn.softmax(score, axis=1)                            # softmax over S
    attn_perm = jnp.transpose(attn, (0, 2, 1))                      # (B,1,S)
    attn_weighted = jnp.einsum("bos,bsd->bod", attn_perm, enc)      # (B,1,D)
    attn_value = jnp.sum(attn_weighted, axis=1)                     # (B,D)
    dec_sq = dec[:, :, 0]                                           # (B,D)
    cat = jnp.concatenate([dec_sq, attn_value], axis=1)             # (B,2D)
    h = jax.nn.relu(jnp.tanh(cat))
    y = h @ w + b[0]
    return jax.nn.log_softmax(y, axis=1)


if __name__ == "__main__":
    # Small shapes consistent with the module:
    #   hidden_size = 16  -> encoder dim D = 2*hidden = 32, fc in = 2*D = 64
    #   seq len S = 8, batch B = 16 (exercises the batch-tiled grid: Bt=8, 2 steps),
    #   output_size O = 16
    hidden_size = 16
    output_size = 16
    B, S = 16, 8
    D = 2 * hidden_size

    key = jax.random.PRNGKey(0)
    k_enc, k_dec, k_w, k_b = jax.random.split(key, 4)

    encoder_hiddens = jax.random.normal(k_enc, (B, S, D), dtype=jnp.float32)
    decoder_end_state = jax.random.normal(k_dec, (B, D, 1), dtype=jnp.float32)

    # Deterministic "Linear" params: weight stored as (in_features, out_features) = fc.weight.T
    fc_w = 0.1 * jax.random.normal(k_w, (2 * D, output_size), dtype=jnp.float32)
    fc_b = 0.1 * jax.random.normal(k_b, (1, output_size), dtype=jnp.float32)

    out = attention_forward(encoder_hiddens, decoder_end_state, fc_w, fc_b)
    out = jax.block_until_ready(out)

    ref = reference(encoder_hiddens, decoder_end_state, fc_w, fc_b)
    assert out.shape == (B, output_size)
    assert jnp.allclose(out, ref, atol=1e-5, rtol=1e-5), "mismatch vs JAX reference"

    print("KERNEL_OK")
</pallas_src>

<mosaic_0001>
module attributes {stable_mosaic.version = 11 : i64} {
  func.func @attention_kernel(%arg0: i32, %arg1: memref<8x8x32xf32, #tpu.memory_space<vmem>>, %arg2: memref<8x32xf32, #tpu.memory_space<vmem>>, %arg3: memref<32x16xf32, #tpu.memory_space<vmem>>, %arg4: memref<32x16xf32, #tpu.memory_space<vmem>>, %arg5: memref<1x16xf32, #tpu.memory_space<vmem>>, %arg6: memref<8x16xf32, #tpu.memory_space<vmem>>) attributes {dimension_semantics = [#tpu.dimension_semantics<parallel>], iteration_bounds = array<i64: 2>, scalar_prefetch = 0 : i64, scratch_operands = 0 : i64, tpu.core_type = #tpu.core_type<tc>, window_params = [{transform_indices = @transform_0, window_bounds = array<i64: 8, 8, 32>}, {transform_indices = @transform_1, window_bounds = array<i64: 8, 32>}, {pipeline_mode = #tpu.pipeline_mode<synchronous>, transform_indices = @transform_2, window_bounds = array<i64: 32, 16>}, {pipeline_mode = #tpu.pipeline_mode<synchronous>, transform_indices = @transform_3, window_bounds = array<i64: 32, 16>}, {pipeline_mode = #tpu.pipeline_mode<synchronous>, transform_indices = @transform_4, window_bounds = array<i64: 1, 16>}, {transform_indices = @transform_5, window_bounds = array<i64: 8, 16>}]} {
    %c0 = arith.constant 0 : index
    %c0_0 = arith.constant 0 : index
    %c0_1 = arith.constant 0 : index
    %0 = vector.load %arg1[%c0, %c0_0, %c0_1] : memref<8x8x32xf32, #tpu.memory_space<vmem>>, vector<8x8x32xf32>
    %c0_2 = arith.constant 0 : index
    %c0_3 = arith.constant 0 : index
    %1 = vector.load %arg2[%c0_2, %c0_3] : memref<8x32xf32, #tpu.memory_space<vmem>>, vector<8x32xf32>
    %2 = vector.shape_cast %1 : vector<8x32xf32> to vector<8x1x32xf32>
    %3 = vector.broadcast %2 : vector<8x1x32xf32> to vector<8x8x32xf32>
    %4 = arith.mulf %0, %3 : vector<8x8x32xf32>
    %cst = arith.constant dense<0.000000e+00> : vector<8x8xf32>
    %5 = vector.multi_reduction <add>, %4, %cst [2] : vector<8x8x32xf32> to vector<8x8xf32>
    %cst_4 = arith.constant dense<0xFF800000> : vector<8xf32>
    %6 = vector.multi_reduction <maximumf>, %5, %cst_4 [1] : vector<8x8xf32> to vector<8xf32>
    %7 = vector.shape_cast %6 : vector<8xf32> to vector<8x1xf32>
    %8 = vector.broadcast %7 : vector<8x1xf32> to vector<8x8xf32>
    %9 = arith.subf %5, %8 : vector<8x8xf32>
    %10 = math.exp %9 : vector<8x8xf32>
    %cst_5 = arith.constant dense<0.000000e+00> : vector<8xf32>
    %11 = vector.multi_reduction <add>, %10, %cst_5 [1] : vector<8x8xf32> to vector<8xf32>
    %12 = vector.shape_cast %11 : vector<8xf32> to vector<8x1xf32>
    %13 = vector.broadcast %12 : vector<8x1xf32> to vector<8x8xf32>
    %14 = arith.divf %10, %13 : vector<8x8xf32>
    %15 = vector.shape_cast %14 : vector<8x8xf32> to vector<8x8x1xf32>
    %16 = vector.broadcast %15 : vector<8x8x1xf32> to vector<8x8x32xf32>
    %17 = arith.mulf %16, %0 : vector<8x8x32xf32>
    %cst_6 = arith.constant dense<0.000000e+00> : vector<8x32xf32>
    %18 = vector.multi_reduction <add>, %17, %cst_6 [1] : vector<8x8x32xf32> to vector<8x32xf32>
    %19 = math.tanh %1 : vector<8x32xf32>
    %cst_7 = arith.constant 0.000000e+00 : f32
    %20 = vector.broadcast %cst_7 : f32 to vector<8x32xf32>
    %21 = arith.maximumf %19, %20 : vector<8x32xf32>
    %22 = math.tanh %18 : vector<8x32xf32>
    %cst_8 = arith.constant 0.000000e+00 : f32
    %23 = vector.broadcast %cst_8 : f32 to vector<8x32xf32>
    %24 = arith.maximumf %22, %23 : vector<8x32xf32>
    %c0_9 = arith.constant 0 : index
    %c0_10 = arith.constant 0 : index
    %25 = vector.load %arg3[%c0_9, %c0_10] : memref<32x16xf32, #tpu.memory_space<vmem>>, vector<32x16xf32>
    %cst_11 = arith.constant dense<0.000000e+00> : vector<8x16xf32>
    %26 = tpu.matmul %21, %25, %cst_11 {dimension_numbers = #tpu.dot_dimension_numbers<[1], [0], [0], [1], [0, 0, 1, 1], [], []>} : vector<8x32xf32>, vector<32x16xf32>, vector<8x16xf32> -> vector<8x16xf32>
    %c0_12 = arith.constant 0 : index
    %c0_13 = arith.constant 0 : index
    %27 = vector.load %arg4[%c0_12, %c0_13] : memref<32x16xf32, #tpu.memory_space<vmem>>, vector<32x16xf32>
    %cst_14 = arith.constant dense<0.000000e+00> : vector<8x16xf32>
    %28 = tpu.matmul %24, %27, %cst_14 {dimension_numbers = #tpu.dot_dimension_numbers<[1], [0], [0], [1], [0, 0, 1, 1], [], []>} : vector<8x32xf32>, vector<32x16xf32>, vector<8x16xf32> -> vector<8x16xf32>
    %29 = arith.addf %26, %28 : vector<8x16xf32>
    %c0_15 = arith.constant 0 : index
    %c0_16 = arith.constant 0 : index
    %30 = vector.load %arg5[%c0_15, %c0_16] : memref<1x16xf32, #tpu.memory_space<vmem>>, vector<1x16xf32>
    %31 = vector.broadcast %30 : vector<1x16xf32> to vector<8x16xf32>
    %32 = arith.addf %29, %31 : vector<8x16xf32>
    %cst_17 = arith.constant dense<0xFF800000> : vector<8xf32>
    %33 = vector.multi_reduction <maximumf>, %32, %cst_17 [1] : vector<8x16xf32> to vector<8xf32>
    %34 = vector.shape_cast %33 : vector<8xf32> to vector<8x1xf32>
    %35 = vector.broadcast %34 : vector<8x1xf32> to vector<8x16xf32>
    %36 = arith.subf %32, %35 : vector<8x16xf32>
    %37 = math.exp %36 : vector<8x16xf32>
    %cst_18 = arith.constant dense<0.000000e+00> : vector<8xf32>
    %38 = vector.multi_reduction <add>, %37, %cst_18 [1] : vector<8x16xf32> to vector<8xf32>
    %39 = vector.shape_cast %38 : vector<8xf32> to vector<8x1xf32>
    %40 = math.log %39 : vector<8x1xf32>
    %41 = vector.broadcast %40 : vector<8x1xf32> to vector<8x16xf32>
    %42 = arith.subf %36, %41 : vector<8x16xf32>
    %c0_19 = arith.constant 0 : index
    %c0_20 = arith.constant 0 : index
    %43 = vector.load %arg6[%c0_19, %c0_20] : memref<8x16xf32, #tpu.memory_space<vmem>>, vector<8x16xf32>
    tpu.vector_store %arg6[%c0_19, %c0_20], %42 {strides = array<i32>} : memref<8x16xf32, #tpu.memory_space<vmem>>, vector<8x16xf32>,
    return
  }
  func.func @transform_0(%arg0: i32) -> (i32, i32, i32) {
    %c0_i32 = arith.constant 0 : i32
    %c0_i32_0 = arith.constant 0 : i32
    %c0_i32_1 = arith.constant 0 : i32
    return %arg0, %c0_i32, %c0_i32_0 : i32, i32, i32
  }
  func.func @transform_1(%arg0: i32) -> (i32, i32) {
    %c0_i32 = arith.constant 0 : i32
    %c0_i32_0 = arith.constant 0 : i32
    return %arg0, %c0_i32 : i32, i32
  }
  func.func @transform_2(%arg0: i32) -> (i32, i32) {
    %c0_i32 = arith.constant 0 : i32
    %c0_i32_0 = arith.constant 0 : i32
    %c0_i32_1 = arith.constant 0 : i32
    return %c0_i32, %c0_i32_0 : i32, i32
  }
  func.func @transform_3(%arg0: i32) -> (i32, i32) {
    %c0_i32 = arith.constant 0 : i32
    %c0_i32_0 = arith.constant 0 : i32
    %c0_i32_1 = arith.constant 0 : i32
    return %c0_i32, %c0_i32_0 : i32, i32
  }
  func.func @transform_4(%arg0: i32) -> (i32, i32) {
    %c0_i32 = arith.constant 0 : i32
    %c0_i32_0 = arith.constant 0 : i32
    %c0_i32_1 = arith.constant 0 : i32
    return %c0_i32, %c0_i32_0 : i32, i32
  }
  func.func @transform_5(%arg0: i32) -> (i32, i32) {
    %c0_i32 = arith.constant 0 : i32
    %c0_i32_0 = arith.constant 0 : i32
    return %arg0, %c0_i32 : i32, i32
  }
}

</mosaic_0001>

<llo_original>
// kernel: tpu_custom_call.1
$region0: #{tpu_custom_call.1}
  #allocation0 [shape = 'u32[]', space=smem, size = 0x4, offset = 0x4, fixed_abs, tag = 'smem constant byte address 0x4 - core index']
  #allocation1 [shape = 'u32[144,128]{1,0:T(1,128)}', space=vmem, size = 0x12000, scoped, tag = 'internal scratch']
  %s0 = inlined_call_operand.hbm [shape: f32[16,8,32], index: 0, kind: input, shape index: {}]
  %s1 = inlined_call_operand.vmem [shape: f32[16,32], index: 1, kind: input, shape index: {}]
  %s2 = inlined_call_operand.vmem [shape: f32[32,16], index: 2, kind: input, shape index: {}]
  %s3 = inlined_call_operand.vmem [shape: f32[32,16], index: 3, kind: input, shape index: {}]
  %s4 = inlined_call_operand.vmem [shape: f32[1,16], index: 4, kind: input, shape index: {}]
  %s5 = inlined_call_operand.hbm [shape: f32[16,16], index: 5, kind: output, shape index: {}]
  %s6 = sld [smem:[#allocation0]]
  $region57: #{tpu_custom_call.1} parent=0
    _
  %s8 = ssub.s32 1, %s6
  %s9 = scalar_select 0, %s8, %s6
  $region1: #{tpu_custom_call.1} parent=0
    #allocation2 [shape = 'u8[65536]{0}', space=vmem, size = 0x10000, scoped, tag = 'input window, operand 0']
    #allocation3 [shape = 's32[2]{0}', space=sflag, size = 0x8, scoped, tag = 'scoped memory for tpu_custom_call.1']
    #allocation4 [shape = 's32[2]{0}', space=sflag, size = 0x8, scoped, tag = 'scoped memory for tpu_custom_call.1']
    #allocation5 [shape = 'u8[8192]{0}', space=vmem, size = 0x2000, scoped, tag = 'output window, operand 0']
    %10 = vsyncpa [#allocation3], 0
    %s11 = scalar_lea.sflag [#allocation3], 1
    %12 = vsyncpa %s11, 0
    %13 = vsyncpa [#allocation4], 0
    %s14 = scalar_lea.sflag [#allocation4], 1
    %15 = vsyncpa %s14, 0
    loop: start=0, step=1, limit=4
    $region2: #{tpu_custom_call.1} parent=1 // loop_pre_header
      _
    $region3: #{tpu_custom_call.1} parent=1 // loop_header
      %s17 = sphi 0, %s21
      %p18 = scmp.ge.s32.totalorder %s17, 4
      %s27 = sphi 0, %s29
      %s30 = sphi 0, %s27
      %s31 = sphi 0, %s30
      %s47 = sphi 0, %s31
      %s53 = sphi 0, %s55
      %s56 = sphi 0, %s53
      %s57 = sphi 0, %s56
      %s73 = sphi 0, %s57
      %s77 = sphi 0, %s77
      %s79 = sphi 0, %s77
      %s80 = sphi 0, %s79
      %s94 = sphi 0, %s80
      %s98 = sphi 0, %s98
      %s100 = sphi 0, %s98
      %s101 = sphi 0, %s100
      %s115 = sphi 0, %s101
      %s119 = sphi 0, %s119
      %s121 = sphi 0, %s119
      %s122 = sphi 0, %s121
      %s136 = sphi 0, %s122
      %s142 = sphi 0, %s144
      %s145 = sphi 0, %s142
      %s146 = sphi 0, %s145
      %s162 = sphi 0, %s146
    $region4: #{tpu_custom_call.1} parent=1 // loop_header_branch
      %20 = sbr.rel (%p18) target = $region8
    $region5: #{tpu_custom_call.1} parent=1 // loop_body
      %s22 = ssub.s32 %s17, 1
      %s23 = ssub.s32 %s17, 2
      %s24 = sadd.s32 %s17, 1
      %s25 = ssub.s32 %s17, %s24
      %p26 = scmp.eq.s32.totalorder %s25, 0
      %s28 = sadd.s32 %s27, 1
      %s29 = scalar_select %p26, %s27, %s28
      %p32 = pneg %p26
      %p33 = scmp.eq.s32.totalorder %s17, 1
      %p34 = por %p32, %p33
      %p35 = scmp.ne.s32.totalorder %s27, %s30
      %p36 = scmp.eq.s32.totalorder %s17, 0
      %p37 = por %p35, %p36
      %p38 = scmp.ne.s32.totalorder %s27, %s30
      %p39 = scmp.eq.s32.totalorder %s22, 1
      %p40 = por %p38, %p39
      %p41 = scmp.ne.s32.totalorder %s30, %s31
      %p42 = scmp.eq.s32.totalorder %s22, 0
      %p43 = por %p41, %p42
      %p44 = scmp.ne.s32.totalorder %s30, %s31
      %p45 = scmp.eq.s32.totalorder %s23, 1
      %p46 = por %p44, %p45
      %p48 = scmp.ne.s32.totalorder %s31, %s47
      %p49 = scmp.eq.s32.totalorder %s23, 0
      %p50 = por %p48, %p49
      %s51 = ssub.s32 %s17, %s24
      %p52 = scmp.eq.s32.totalorder %s51, 0
      %s54 = sadd.s32 %s53, 1
      %s55 = scalar_select %p52, %s53, %s54
      %p58 = pneg %p52
      %p59 = scmp.eq.s32.totalorder %s17, 1
      %p60 = por %p58, %p59
      %p61 = scmp.ne.s32.totalorder %s53, %s56
      %p62 = scmp.eq.s32.totalorder %s17, 0
      %p63 = por %p61, %p62
      %p64 = scmp.ne.s32.totalorder %s53, %s56
      %p65 = scmp.eq.s32.totalorder %s22, 1
      %p66 = por %p64, %p65
      %p67 = scmp.ne.s32.totalorder %s56, %s57
      %p68 = scmp.eq.s32.totalorder %s22, 0
      %p69 = por %p67, %p68
      %p70 = scmp.ne.s32.totalorder %s56, %s57
      %p71 = scmp.eq.s32.totalorder %s23, 1
      %p72 = por %p70, %p71
      %p74 = scmp.ne.s32.totalorder %s57, %s73
      %p75 = scmp.eq.s32.totalorder %s23, 0
      %p76 = por %p74, %p75
      %s78 = sadd.s32 %s77, 1
      %p81 = scmp.eq.s32.totalorder %s17, 1
      %p82 = scmp.ne.s32.totalorder %s77, %s79
      %p83 = scmp.eq.s32.totalorder %s17, 0
      %p84 = por %p82, %p83
      %p85 = scmp.ne.s32.totalorder %s77, %s79
      %p86 = scmp.eq.s32.totalorder %s22, 1
      %p87 = por %p85, %p86
      %p88 = scmp.ne.s32.totalorder %s79, %s80
      %p89 = scmp.eq.s32.totalorder %s22, 0
      %p90 = por %p88, %p89
      %p91 = scmp.ne.s32.totalorder %s79, %s80
      %p92 = scmp.eq.s32.totalorder %s23, 1
      %p93 = por %p91, %p92
      %p95 = scmp.ne.s32.totalorder %s80, %s94
      %p96 = scmp.eq.s32.totalorder %s23, 0
      %p97 = por %p95, %p96
      %s99 = sadd.s32 %s98, 1
      %p102 = scmp.eq.s32.totalorder %s17, 1
      %p103 = scmp.ne.s32.totalorder %s98, %s100
      %p104 = scmp.eq.s32.totalorder %s17, 0
      %p105 = por %p103, %p104
      %p106 = scmp.ne.s32.totalorder %s98, %s100
      %p107 = scmp.eq.s32.totalorder %s22, 1
      %p108 = por %p106, %p107
      %p109 = scmp.ne.s32.totalorder %s100, %s101
      %p110 = scmp.eq.s32.totalorder %s22, 0
      %p111 = por %p109, %p110
      %p112 = scmp.ne.s32.totalorder %s100, %s101
      %p113 = scmp.eq.s32.totalorder %s23, 1
      %p114 = por %p112, %p113
      %p116 = scmp.ne.s32.totalorder %s101, %s115
      %p117 = scmp.eq.s32.totalorder %s23, 0
      %p118 = por %p116, %p117
      %s120 = sadd.s32 %s119, 1
      %p123 = scmp.eq.s32.totalorder %s17, 1
      %p124 = scmp.ne.s32.totalorder %s119, %s121
      %p125 = scmp.eq.s32.totalorder %s17, 0
      %p126 = por %p124, %p125
      %p127 = scmp.ne.s32.totalorder %s119, %s121
      %p128 = scmp.eq.s32.totalorder %s22, 1
      %p129 = por %p127, %p128
      %p130 = scmp.ne.s32.totalorder %s121, %s122
      %p131 = scmp.eq.s32.totalorder %s22, 0
      %p132 = por %p130, %p131
      %p133 = scmp.ne.s32.totalorder %s121, %s122
      %p134 = scmp.eq.s32.totalorder %s23, 1
      %p135 = por %p133, %p134
      %p137 = scmp.ne.s32.totalorder %s122, %s136
      %p138 = scmp.eq.s32.totalorder %s23, 0
      %p139 = por %p137, %p138
      %s140 = ssub.s32 %s17, %s24
      %p141 = scmp.eq.s32.totalorder %s140, 0
      %s143 = sadd.s32 %s142, 1
      %s144 = scalar_select %p141, %s142, %s143
      %p147 = pneg %p141
      %p148 = scmp.eq.s32.totalorder %s17, 1
      %p149 = por %p147, %p148
      %p150 = scmp.ne.s32.totalorder %s142, %s145
      %p151 = scmp.eq.s32.totalorder %s17, 0
      %p152 = por %p150, %p151
      %p153 = scmp.ne.s32.totalorder %s142, %s145
      %p154 = scmp.eq.s32.totalorder %s22, 1
      %p155 = por %p153, %p154
      %p156 = scmp.ne.s32.totalorder %s145, %s146
      %p157 = scmp.eq.s32.totalorder %s22, 0
      %p158 = por %p156, %p157
      %p159 = scmp.ne.s32.totalorder %s145, %s146
      %p160 = scmp.eq.s32.totalorder %s23, 1
      %p161 = por %p159, %p160
      %p163 = scmp.ne.s32.totalorder %s146, %s162
      %p164 = scmp.eq.s32.totalorder %s23, 0
      %p165 = por %p163, %p164
      %p166 = scmp.le.s32.totalorder 1, %s17
      %p167 = scmp.lt.s32.totalorder %s17, 3
      %p168 = pnand %p166, %p167
      %p169 = pneg %p168
      // Predicated region
      $region9: #{tpu_custom_call.1} parent=5 // pred_check
        _
      $region10: #{tpu_custom_call.1} parent=5 // pred_check_branch
        %171 = sbr.rel (%p168) target = $region12
      $region11: #{tpu_custom_call.1} parent=5 // pred_region
        %s172 = ssub.s32 %s17, 1
        // Predicated region
        $region13: #{tpu_custom_call.1} parent=11 // pred_check
          %p173 = pneg %p90
        $region14: #{tpu_custom_call.1} parent=11 // pred_check_branch
          %175 = sbr.rel (%p173) target = $region16
        $region15: #{tpu_custom_call.1} parent=11 // pred_region
          _
        $region16: #{tpu_custom_call.1} parent=11 // pred_fallthru
          _
        // Predicated region
        $region17: #{tpu_custom_call.1} parent=11 // pred_check
          %p176 = pneg %p111
        $region18: #{tpu_custom_call.1} parent=11 // pred_check_branch
          %178 = sbr.rel (%p176) target = $region20
        $region19: #{tpu_custom_call.1} parent=11 // pred_region
          _
        $region20: #{tpu_custom_call.1} parent=11 // pred_fallthru
          _
        // Predicated region
        $region21: #{tpu_custom_call.1} parent=11 // pred_check
          %p179 = pneg %p132
        $region22: #{tpu_custom_call.1} parent=11 // pred_check_branch
          %181 = sbr.rel (%p179) target = $region24
        $region23: #{tpu_custom_call.1} parent=11 // pred_region
          _
        $region24: #{tpu_custom_call.1} parent=11 // pred_fallthru
          _
      $region12: #{tpu_custom_call.1} parent=5 // pred_fallthru
        _
      %p182 = scmp.lt.s32.totalorder %s17, 2
      // Predicated region
      $region25: #{tpu_custom_call.1} parent=5 // pred_check
        %p183 = pneg %p182
      $region26: #{tpu_custom_call.1} parent=5 // pred_check_branch
        %185 = sbr.rel (%p183) target = $region28
      $region27: #{tpu_custom_call.1} parent=5 // pred_region
        // Predicated region
        $region29: #{tpu_custom_call.1} parent=27 // pred_check
          %p186 = pneg %p37
        $region30: #{tpu_custom_call.1} parent=27 // pred_check_branch
          %188 = sbr.rel (%p186) target = $region32
        $region31: #{tpu_custom_call.1} parent=27 // pred_region
          %s189 = sand.u32 %s27, 1
          %s190 = scalar_lea.sflag [#allocation3], %s189
          %s191 = sand.u32 %s27, 1
          %s192 = smul.addr %s191, 64
          %s193 = scalar_lea.vmem [#allocation2], %s192
          %s194 = smul.u32 8, %s17
          %s196 = ssub.s32 1024, 1024
          %197 = vsyncadd %s190, %s196
          %s198 = smul.addr %s194, 128
          %s199 = scalar_lea.hbm %s0, %s198
          %s200 = sshll.u32 %s193, 4
          %s201 = int_to_ptr.vmem [resolvable:$true] %s200
          %206 = dma.hbm_to_vmem [thread:$0]  %s199, 1024, %s201, %s190, 128, 128, 8
        $region32: #{tpu_custom_call.1} parent=27 // pred_fallthru
          _
        // Predicated region
        $region33: #{tpu_custom_call.1} parent=27 // pred_check
          %p207 = pneg %p63
        $region34: #{tpu_custom_call.1} parent=27 // pred_check_branch
          %209 = sbr.rel (%p207) target = $region36
        $region35: #{tpu_custom_call.1} parent=27 // pred_region
          %p210 = scmp.lt.s32.totalorder %s17, 1
          %s211 = scalar_select %p210, %s17, 1
          %s212 = smul.addr %s211, 8
          %s213 = scalar_lea.vmem %s1, %s212
        $region36: #{tpu_custom_call.1} parent=27 // pred_fallthru
          _
      $region28: #{tpu_custom_call.1} parent=5 // pred_fallthru
        _
      %p214 = scmp.le.s32.totalorder 1, %s17
      %p215 = scmp.lt.s32.totalorder %s17, 3
      %p216 = pnand %p214, %p215
      %p217 = pneg %p216
      // Predicated region
      $region37: #{tpu_custom_call.1} parent=5 // pred_check
        _
      $region38: #{tpu_custom_call.1} parent=5 // pred_check_branch
        %219 = sbr.rel (%p216) target = $region40
      $region39: #{tpu_custom_call.1} parent=5 // pred_region
        %s220 = ssub.s32 %s17, 1
        %s221 = sand.u32 %s30, 1
        %s222 = scalar_lea.sflag [#allocation3], %s221
        %s223 = sand.u32 %s30, 1
        %s224 = smul.addr %s223, 64
        %s225 = scalar_lea.vmem [#allocation2], %s224
        // Predicated region
        $region41: #{tpu_custom_call.1} parent=39 // pred_check
          %p226 = pneg %p43
        $region42: #{tpu_custom_call.1} parent=39 // pred_check_branch
          %228 = sbr.rel (%p226) target = $region44
        $region43: #{tpu_custom_call.1} parent=39 // pred_region
          %229 = dma.done %s222, 1024
        $region44: #{tpu_custom_call.1} parent=39 // pred_fallthru
          _
        %s230 = sand.u32 %s30, 1
        %s231 = scalar_lea.sflag [#allocation3], %s230
        %s232 = sand.u32 %s30, 1
        %s233 = smul.addr %s232, 64
        %s234 = scalar_lea.vmem [#allocation2], %s233
        %p235 = pneg %p43
        %p236 = pneg %p40
        %p237 = scmp.lt.s32.totalorder %s22, 1
        %s238 = scalar_select %p237, %s22, 1
        %s239 = smul.addr %s238, 8
        %s240 = scalar_lea.vmem %s1, %s239
        %p241 = pneg %p69
        %p242 = pneg %p66
        %p243 = pneg %p90
        %p244 = pneg %p87
        %p245 = pneg %p111
        %p246 = pneg %p108
        %p247 = pneg %p132
        %p248 = pneg %p129
        %p249 = pneg %p158
        %p250 = pneg %p155
        %s251 = sand.u32 %s145, 1
        %s252 = scalar_lea.sflag [#allocation4], %s251
        %s253 = sand.u32 %s145, 1
        %s254 = smul.addr %s253, 8
        %s255 = scalar_lea.vmem [#allocation5], %s254
        %s256 = smul.u32 8, %s22
        %p257 = scmp.lt.s32.totalorder %s22, 1
        %s258 = scalar_select %p257, %s22, 1
        %s259 = smul.addr %s258, 8
        %s260 = scalar_lea.vmem %s1, %s259
        %v261 = vld [vmem:[%s225] sm:$0xff]
        %v262 = vld [vmem:[%s225 + $0x8] sm:$0xff]
        %v263 = vld [vmem:[%s225 + $0x10] sm:$0xff]
        %v264 = vld [vmem:[%s225 + $0x18] sm:$0xff]
        %v265 = vld [vmem:[%s225 + $0x20] sm:$0xff]
        %v266 = vld [vmem:[%s225 + $0x28] sm:$0xff]
        %v267 = vld [vmem:[%s225 + $0x30] sm:$0xff]
        %v268 = vld [vmem:[%s225 + $0x38] sm:$0xff]
        %v269 = vld [vmem:[%s260] sm:$0xff]
        %v271 = vcombine.high %v269, %v269
        %v273 = vunpack.c.l.s4 1966171168
        %v274 = vunpack.c.0.s8 %v273
        %v275 = vlaneseq
        %v276 = vshrl.u32 %v275, 7
        %v277 = vsub.s32 %v274, %v276
        %v278 = vrot.slane %v269, %v277
        %v280 = vunpack.c.l.s4 1966171168
        %v281 = vunpack.c.0.s8 %v280
        %v282 = vlaneseq
        %v283 = vshrl.u32 %v282, 7
        %v284 = vsub.s32 %v281, %v283
        %v285 = vrot.slane %v271, %v284
        %v286 = vcombine.high %v278, %v278
        %v287 = vcombine.high %v285, %v285
        %v289 = vunpack.c.l.s4 1966171168
        %v290 = vunpack.c.0.s8 %v289
        %v291 = vlaneseq
        %v292 = vshrl.u32 %v291, 7
        %v293 = vsub.s32 %v290, %v292
        %v294 = vrot.slane %v278, %v293
        %v296 = vunpack.c.l.s4 1966171168
        %v297 = vunpack.c.0.s8 %v296
        %v298 = vlaneseq
        %v299 = vshrl.u32 %v298, 7
        %v300 = vsub.s32 %v297, %v299
        %v301 = vrot.slane %v285, %v300
        %v303 = vunpack.c.l.s4 1966171168
        %v304 = vunpack.c.0.s8 %v303
        %v305 = vlaneseq
        %v306 = vshrl.u32 %v305, 7
        %v307 = vsub.s32 %v304, %v306
        %v308 = vrot.slane %v286, %v307
        %v310 = vunpack.c.l.s4 1966171168
        %v311 = vunpack.c.0.s8 %v310
        %v312 = vlaneseq
        %v313 = vshrl.u32 %v312, 7
        %v314 = vsub.s32 %v311, %v313
        %v315 = vrot.slane %v287, %v314
        %v316 = vcombine.high %v294, %v294
        %v317 = vcombine.high %v301, %v301
        %v318 = vcombine.high %v308, %v308
        %v319 = vcombine.high %v315, %v315
        %v320 = vlaneseq
        %v321 = vshrl.u32 %v320, 7
        %v322 = vsub.s32 0, %v321
        %v323 = vrot.slane %v294, %v322
        %v324 = vlaneseq
        %v325 = vshrl.u32 %v324, 7
        %v326 = vsub.s32 0, %v325
        %v327 = vrot.slane %v308, %v326
        %v328 = vlaneseq
        %v329 = vshrl.u32 %v328, 7
        %v330 = vsub.s32 0, %v329
        %v331 = vrot.slane %v316, %v330
        %v332 = vlaneseq
        %v333 = vshrl.u32 %v332, 7
        %v334 = vsub.s32 0, %v333
        %v335 = vrot.slane %v318, %v334
        %v336 = vlaneseq
        %v337 = vshrl.u32 %v336, 7
        %v338 = vsub.s32 0, %v337
        %v339 = vrot.slane %v301, %v338
        %v340 = vlaneseq
        %v341 = vshrl.u32 %v340, 7
        %v342 = vsub.s32 0, %v341
        %v343 = vrot.slane %v315, %v342
        %v344 = vlaneseq
        %v345 = vshrl.u32 %v344, 7
        %v346 = vsub.s32 0, %v345
        %v347 = vrot.slane %v317, %v346
        %v348 = vlaneseq
        %v349 = vshrl.u32 %v348, 7
        %v350 = vsub.s32 0, %v349
        %v351 = vrot.slane %v319, %v350
        %v360 = vmul.f32 %v261, %v323
        %v361 = vmul.f32 %v262, %v327
        %v362 = vmul.f32 %v263, %v331
        %v363 = vmul.f32 %v264, %v335
        %v364 = vmul.f32 %v265, %v339
        %v365 = vmul.f32 %v266, %v343
        %v366 = vmul.f32 %v267, %v347
        %v367 = vmul.f32 %v268, %v351
        %vm368 = vcmask 261120
        %v369 = vsel %vm368, %v360, 0.0
        %370 = vadd.xlane.f32.xlu0 %v369
        %v371 = vpop.xlane.xlu0 %370
        %v372 = vsel %vm368, %v361, 0.0
        %373 = vadd.xlane.f32.xlu0 %v372
        %v374 = vpop.xlane.xlu0 %373
        %v375 = vsel %vm368, %v362, 0.0
        %376 = vadd.xlane.f32.xlu0 %v375
        %v377 = vpop.xlane.xlu0 %376
        %v378 = vsel %vm368, %v363, 0.0
        %379 = vadd.xlane.f32.xlu0 %v378
        %v380 = vpop.xlane.xlu0 %379
        %v381 = vsel %vm368, %v364, 0.0
        %382 = vadd.xlane.f32.xlu0 %v381
        %v383 = vpop.xlane.xlu0 %382
        %v384 = vsel %vm368, %v365, 0.0
        %385 = vadd.xlane.f32.xlu0 %v384
        %v386 = vpop.xlane.xlu0 %385
        %v387 = vsel %vm368, %v366, 0.0
        %388 = vadd.xlane.f32.xlu0 %v387
        %v389 = vpop.xlane.xlu0 %388
        %v390 = vsel %vm368, %v367, 0.0
        %391 = vadd.xlane.f32.xlu0 %v390
        %v392 = vpop.xlane.xlu0 %391
        %v401 = vlaneseq
        %v402 = vand.u32 %v401, 127
        %v403 = vlaneseq
        %v404 = vshrl.u32 %v403, 7
        %v405 = vsub.s32 %v402, %v404
        %v406 = vrot.slane %v371, %v405
        %v407 = vlaneseq
        %v408 = vshrl.u32 %v407, 7
        %v409 = vsub.s32 %v402, %v408
        %v410 = vrot.slane %v374, %v409
        %v411 = vlaneseq
        %v412 = vshrl.u32 %v411, 7
        %v413 = vsub.s32 %v402, %v412
        %v414 = vrot.slane %v377, %v413
        %v415 = vlaneseq
        %v416 = vshrl.u32 %v415, 7
        %v417 = vsub.s32 %v402, %v416
        %v418 = vrot.slane %v380, %v417
        %v419 = vlaneseq
        %v420 = vshrl.u32 %v419, 7
        %v421 = vsub.s32 %v402, %v420
        %v422 = vrot.slane %v383, %v421
        %v423 = vlaneseq
        %v424 = vshrl.u32 %v423, 7
        %v425 = vsub.s32 %v402, %v424
        %v426 = vrot.slane %v386, %v425
        %v427 = vlaneseq
        %v428 = vshrl.u32 %v427, 7
        %v429 = vsub.s32 %v402, %v428
        %v430 = vrot.slane %v389, %v429
        %v431 = vlaneseq
        %v432 = vshrl.u32 %v431, 7
        %v433 = vsub.s32 %v402, %v432
        %v434 = vrot.slane %v392, %v433
        %vm435 = vcmask 1041409
        %v436 = vsel %vm435, %v410, %v406
        %vm437 = vcmask 1042434
        %v438 = vsel %vm437, %v414, %v436
        %vm439 = vcmask 1043459
        %v440 = vsel %vm439, %v418, %v438
        %vm441 = vcmask 1044484
        %v442 = vsel %vm441, %v422, %v440
        %vm443 = vcmask 1045509
        %v444 = vsel %vm443, %v426, %v442
        %vm445 = vcmask 1046534
        %v446 = vsel %vm445, %v430, %v444
        %vm447 = vcmask 1047559
        %v448 = vsel %vm447, %v434, %v446
        %vm450 = vcmask 64512
        %v451 = vsel %vm450, %v448, -inf
        %452 = vmax.xlane.f32.xlu0 %v451
        %v453 = vpop.xlane.xlu0 %452
        %v455 = vlaneseq
        %v456 = vshrl.u32 %v455, 7
        %v457 = vsub.s32 0, %v456
        %v458 = vrot.slane %v453, %v457
        %v459 = vlaneseq
        %v460 = vshrl.u32 %v459, 7
        %v461 = vsub.s32 1, %v460
        %v462 = vrot.slane %v453, %v461
        %v463 = vlaneseq
        %v464 = vshrl.u32 %v463, 7
        %v465 = vsub.s32 2, %v464
        %v466 = vrot.slane %v453, %v465
        %v467 = vlaneseq
        %v468 = vshrl.u32 %v467, 7
        %v469 = vsub.s32 3, %v468
        %v470 = vrot.slane %v453, %v469
        %v471 = vlaneseq
        %v472 = vshrl.u32 %v471, 7
        %v473 = vsub.s32 4, %v472
        %v474 = vrot.slane %v453, %v473
        %v475 = vlaneseq
        %v476 = vshrl.u32 %v475, 7
        %v477 = vsub.s32 5, %v476
        %v478 = vrot.slane %v453, %v477
        %v479 = vlaneseq
        %v480 = vshrl.u32 %v479, 7
        %v481 = vsub.s32 6, %v480
        %v482 = vrot.slane %v453, %v481
        %v483 = vlaneseq
        %v484 = vshrl.u32 %v483, 7
        %v485 = vsub.s32 7, %v484
        %v486 = vrot.slane %v453, %v485
        %v495 = vsub.f32 %v371, %v458
        %v496 = vsub.f32 %v374, %v462
        %v497 = vsub.f32 %v377, %v466
        %v498 = vsub.f32 %v380, %v470
        %v499 = vsub.f32 %v383, %v474
        %v500 = vsub.f32 %v386, %v478
        %v501 = vsub.f32 %v389, %v482
        %v502 = vsub.f32 %v392, %v486
        %v503 = vmul.f32 %v495, 1.442695
        %v504 = vpow.pop %v503
        %v505 = vmul.f32 %v496, 1.442695
        %v506 = vpow.pop %v505
        %v507 = vmul.f32 %v497, 1.442695
        %v508 = vpow.pop %v507
        %v509 = vmul.f32 %v498, 1.442695
        %v510 = vpow.pop %v509
        %v511 = vmul.f32 %v499, 1.442695
        %v512 = vpow.pop %v511
        %v513 = vmul.f32 %v500, 1.442695
        %v514 = vpow.pop %v513
        %v515 = vmul.f32 %v501, 1.442695
        %v516 = vpow.pop %v515
        %v517 = vmul.f32 %v502, 1.442695
        %v518 = vpow.pop %v517
        %527 = vset.pattern.permute.xlu0 0
        %528 = vperm.xlu0 %527, %v504
        %v529 = vpop.permute.xlu0 %528
        %530 = vset.pattern.permute.xlu0 0
        %531 = vperm.xlu0 %530, %v506
        %v532 = vpop.permute.xlu0 %531
        %533 = vset.pattern.permute.xlu0 0
        %534 = vperm.xlu0 %533, %v508
        %v535 = vpop.permute.xlu0 %534
        %536 = vset.pattern.permute.xlu0 0
        %537 = vperm.xlu0 %536, %v510
        %v538 = vpop.permute.xlu0 %537
        %539 = vset.pattern.permute.xlu0 0
        %540 = vperm.xlu0 %539, %v512
        %v541 = vpop.permute.xlu0 %540
        %542 = vset.pattern.permute.xlu0 0
        %543 = vperm.xlu0 %542, %v514
        %v544 = vpop.permute.xlu0 %543
        %545 = vset.pattern.permute.xlu0 0
        %546 = vperm.xlu0 %545, %v516
        %v547 = vpop.permute.xlu0 %546
        %548 = vset.pattern.permute.xlu0 0
        %549 = vperm.xlu0 %548, %v518
        %v550 = vpop.permute.xlu0 %549
        %v551 = vlaneseq
        %v552 = vshrl.u32 %v551, 7
        %v553 = vsub.s32 %v402, %v552
        %v554 = vrot.slane %v529, %v553
        %v555 = vlaneseq
        %v556 = vshrl.u32 %v555, 7
        %v557 = vsub.s32 %v402, %v556
        %v558 = vrot.slane %v532, %v557
        %v559 = vlaneseq
        %v560 = vshrl.u32 %v559, 7
        %v561 = vsub.s32 %v402, %v560
        %v562 = vrot.slane %v535, %v561
        %v563 = vlaneseq
        %v564 = vshrl.u32 %v563, 7
        %v565 = vsub.s32 %v402, %v564
        %v566 = vrot.slane %v538, %v565
        %v567 = vlaneseq
        %v568 = vshrl.u32 %v567, 7
        %v569 = vsub.s32 %v402, %v568
        %v570 = vrot.slane %v541, %v569
        %v571 = vlaneseq
        %v572 = vshrl.u32 %v571, 7
        %v573 = vsub.s32 %v402, %v572
        %v574 = vrot.slane %v544, %v573
        %v575 = vlaneseq
        %v576 = vshrl.u32 %v575, 7
        %v577 = vsub.s32 %v402, %v576
        %v578 = vrot.slane %v547, %v577
        %v579 = vlaneseq
        %v580 = vshrl.u32 %v579, 7
        %v581 = vsub.s32 %v402, %v580
        %v582 = vrot.slane %v550, %v581
        %v583 = vsel %vm435, %v558, %v554
        %v584 = vsel %vm437, %v562, %v583
        %v585 = vsel %vm439, %v566, %v584
        %v586 = vsel %vm441, %v570, %v585
        %v587 = vsel %vm443, %v574, %v586
        %v588 = vsel %vm445, %v578, %v587
        %v589 = vsel %vm447, %v582, %v588
        %v591 = vsel %vm450, %v589, 0.0
        %592 = vadd.xlane.f32.xlu0 %v591
        %v593 = vpop.xlane.xlu0 %592
        %v595 = vlaneseq
        %v596 = vshrl.u32 %v595, 7
        %v597 = vsub.s32 0, %v596
        %v598 = vrot.slane %v593, %v597
        %v599 = vlaneseq
        %v600 = vshrl.u32 %v599, 7
        %v601 = vsub.s32 1, %v600
        %v602 = vrot.slane %v593, %v601
        %v603 = vlaneseq
        %v604 = vshrl.u32 %v603, 7
        %v605 = vsub.s32 2, %v604
        %v606 = vrot.slane %v593, %v605
        %v607 = vlaneseq
        %v608 = vshrl.u32 %v607, 7
        %v609 = vsub.s32 3, %v608
        %v610 = vrot.slane %v593, %v609
        %v611 = vlaneseq
        %v612 = vshrl.u32 %v611, 7
        %v613 = vsub.s32 4, %v612
        %v614 = vrot.slane %v593, %v613
        %v615 = vlaneseq
        %v616 = vshrl.u32 %v615, 7
        %v617 = vsub.s32 5, %v616
        %v618 = vrot.slane %v593, %v617
        %v619 = vlaneseq
        %v620 = vshrl.u32 %v619, 7
        %v621 = vsub.s32 6, %v620
        %v622 = vrot.slane %v593, %v621
        %v623 = vlaneseq
        %v624 = vshrl.u32 %v623, 7
        %v625 = vsub.s32 7, %v624
        %v626 = vrot.slane %v593, %v625
        %v635 = vrcp.pop %v598
        %v636 = vmul.f32 %v504, %v635
        %v637 = vrcp.pop %v602
        %v638 = vmul.f32 %v506, %v637
        %v639 = vrcp.pop %v606
        %v640 = vmul.f32 %v508, %v639
        %v641 = vrcp.pop %v610
        %v642 = vmul.f32 %v510, %v641
        %v643 = vrcp.pop %v614
        %v644 = vmul.f32 %v512, %v643
        %v645 = vrcp.pop %v618
        %v646 = vmul.f32 %v514, %v645
        %v647 = vrcp.pop %v622
        %v648 = vmul.f32 %v516, %v647
        %v649 = vrcp.pop %v626
        %v650 = vmul.f32 %v518, %v649
        %652 = vset.pattern.permute.xlu0 0
        %653 = vperm.xlu0 %652, %v636
        %v654 = vpop.permute.xlu0 %653
        %657 = vset.pattern.permute.xlu0 0
        %658 = vperm.xlu0 %657, %v638
        %v659 = vpop.permute.xlu0 %658
        %662 = vset.pattern.permute.xlu0 0
        %663 = vperm.xlu0 %662, %v640
        %v664 = vpop.permute.xlu0 %663
        %667 = vset.pattern.permute.xlu0 0
        %668 = vperm.xlu0 %667, %v642
        %v669 = vpop.permute.xlu0 %668
        %672 = vset.pattern.permute.xlu0 0
        %673 = vperm.xlu0 %672, %v644
        %v674 = vpop.permute.xlu0 %673
        %677 = vset.pattern.permute.xlu0 0
        %678 = vperm.xlu0 %677, %v646
        %v679 = vpop.permute.xlu0 %678
        %682 = vset.pattern.permute.xlu0 0
        %683 = vperm.xlu0 %682, %v648
        %v684 = vpop.permute.xlu0 %683
        %687 = vset.pattern.permute.xlu0 0
        %688 = vperm.xlu0 %687, %v650
        %v689 = vpop.permute.xlu0 %688
        %v691 = vmul.f32 %v654, %v261
        %v692 = vmul.f32 %v659, %v262
        %v693 = vmul.f32 %v664, %v263
        %v694 = vmul.f32 %v669, %v264
        %v695 = vmul.f32 %v674, %v265
        %v696 = vmul.f32 %v679, %v266
        %v697 = vmul.f32 %v684, %v267
        %v698 = vmul.f32 %v689, %v268
        %v699 = vsel %vm368, %v691, 0.0
        %v700 = vrot.slane %v699, 4
        %v701 = vadd.f32 %v699, %v700
        %v702 = vrot.slane %v701, 2
        %v703 = vadd.f32 %v701, %v702
        %v704 = vrot.slane %v703, 1
        %v705 = vadd.f32 %v703, %v704
        %v706 = vsel %vm368, %v692, 0.0
        %v707 = vrot.slane %v706, 4
        %v708 = vadd.f32 %v706, %v707
        %v709 = vrot.slane %v708, 2
        %v710 = vadd.f32 %v708, %v709
        %v711 = vrot.slane %v710, 1
        %v712 = vadd.f32 %v710, %v711
        %v713 = vsel %vm368, %v693, 0.0
        %v714 = vrot.slane %v713, 4
        %v715 = vadd.f32 %v713, %v714
        %v716 = vrot.slane %v715, 2
        %v717 = vadd.f32 %v715, %v716
        %v718 = vrot.slane %v717, 1
        %v719 = vadd.f32 %v717, %v718
        %v720 = vsel %vm368, %v694, 0.0
        %v721 = vrot.slane %v720, 4
        %v722 = vadd.f32 %v720, %v721
        %v723 = vrot.slane %v722, 2
        %v724 = vadd.f32 %v722, %v723
        %v725 = vrot.slane %v724, 1
        %v726 = vadd.f32 %v724, %v725
        %v727 = vsel %vm368, %v695, 0.0
        %v728 = vrot.slane %v727, 4
        %v729 = vadd.f32 %v727, %v728
        %v730 = vrot.slane %v729, 2
        %v731 = vadd.f32 %v729, %v730
        %v732 = vrot.slane %v731, 1
        %v733 = vadd.f32 %v731, %v732
        %v734 = vsel %vm368, %v696, 0.0
        %v735 = vrot.slane %v734, 4
        %v736 = vadd.f32 %v734, %v735
        %v737 = vrot.slane %v736, 2
        %v738 = vadd.f32 %v736, %v737
        %v739 = vrot.slane %v738, 1
        %v740 = vadd.f32 %v738, %v739
        %v741 = vsel %vm368, %v697, 0.0
        %v742 = vrot.slane %v741, 4
        %v743 = vadd.f32 %v741, %v742
        %v744 = vrot.slane %v743, 2
        %v745 = vadd.f32 %v743, %v744
        %v746 = vrot.slane %v745, 1
        %v747 = vadd.f32 %v745, %v746
        %v748 = vsel %vm368, %v698, 0.0
        %v749 = vrot.slane %v748, 4
        %v750 = vadd.f32 %v748, %v749
        %v751 = vrot.slane %v750, 2
        %v752 = vadd.f32 %v750, %v751
        %v753 = vrot.slane %v752, 1
        %v754 = vadd.f32 %v752, %v753
        %v755 = vtanh.pop %v269
        %v756 = vmax.f32 %v755, 0.0
        %v757 = vtanh.pop %v705
        %v758 = vtanh.pop %v712
        %v759 = vtanh.pop %v719
        %v760 = vtanh.pop %v726
        %v761 = vtanh.pop %v733
        %v762 = vtanh.pop %v740
        %v763 = vtanh.pop %v747
        %v764 = vtanh.pop %v754
        %v765 = vmax.f32 %v757, 0.0
        %v766 = vmax.f32 %v758, 0.0
        %v767 = vmax.f32 %v759, 0.0
        %v768 = vmax.f32 %v760, 0.0
        %v769 = vmax.f32 %v761, 0.0
        %v770 = vmax.f32 %v762, 0.0
        %v771 = vmax.f32 %v763, 0.0
        %v772 = vmax.f32 %v764, 0.0
        %v773 = vld [vmem:[%s2] sm:$0xff]
        %v774 = vld [vmem:[%s2 + $0x8] sm:$0xff]
        %v775 = vld [vmem:[%s2 + $0x10] sm:$0xff]
        %v776 = vld [vmem:[%s2 + $0x18] sm:$0xff]
        %v777 = vld [vmem:[%s3] sm:$0xff]
        %v778 = vld [vmem:[%s3 + $0x8] sm:$0xff]
        %v779 = vld [vmem:[%s3 + $0x10] sm:$0xff]
        %v780 = vld [vmem:[%s3 + $0x18] sm:$0xff]
        %v789 = vsel %vm435, %v766, %v765
        %v790 = vsel %vm437, %v767, %v789
        %v791 = vsel %vm439, %v768, %v790
        %v792 = vsel %vm441, %v769, %v791
        %v793 = vsel %vm443, %v770, %v792
        %v794 = vsel %vm445, %v771, %v793
        %v795 = vsel %vm447, %v772, %v794
        %v796 = vsel %vm368, %v795, 0
        %798 = vmatprep.subr.mxu0 0.0
        %799 = vmatpush1.msra.mxu0 0.0
        %800 = vmatprep.subr.mxu0 0.0
        %801 = vmatpush1.msra.mxu0 0.0
        %802 = vmatprep.subr.mxu0 0.0
        %803 = vmatpush1.msra.mxu0 0.0
        %804 = vmatprep.subr.mxu0 0.0
        %805 = vmatpush1.msra.mxu0 0.0
        %806 = vmatprep.subr.mxu0 0.0
        %807 = vmatpush1.msra.mxu0 0.0
        %808 = vmatprep.subr.mxu0 0.0
        %809 = vmatpush1.msra.mxu0 0.0
        %810 = vmatprep.subr.mxu0 0.0
        %811 = vmatpush1.msra.mxu0 0.0
        %812 = vmatprep.subr.mxu0 0.0
        %813 = vmatpush1.msra.mxu0 0.0
        %814 = vmatprep.subr.mxu0 0.0
        %815 = vmatpush1.msra.mxu0 0.0
        %816 = vmatprep.subr.mxu0 0.0
        %817 = vmatpush1.msra.mxu0 0.0
        %818 = vmatprep.subr.mxu0 0.0
        %819 = vmatpush1.msra.mxu0 0.0
        %820 = vmatprep.subr.mxu0 0.0
        %821 = vmatpush1.msra.mxu0 0.0
        %822 = vmatprep.subr.mxu0 0.0
        %823 = vmatpush1.msra.mxu0 %v780
        %824 = vmatprep.subr.mxu0 0.0
        %825 = vmatpush1.msra.mxu0 %v779
        %826 = vmatprep.subr.mxu0 0.0
        %827 = vmatpush1.msra.mxu0 %v778
        %828 = vmatprep.subr.mxu0 0.0
        %829 = vmatpush1.msra.mxu0 %v777
        %830 = vmatprep.subr.mxu0 0.0
        %831 = vmatpush2.msra.mxu0 0.0
        %832 = vmatprep.subr.mxu0 0.0
        %833 = vmatpush2.msra.mxu0 0.0
        %834 = vmatprep.subr.mxu0 0.0
        %835 = vmatpush2.msra.mxu0 0.0
        %836 = vmatprep.subr.mxu0 0.0
        %837 = vmatpush2.msra.mxu0 0.0
        %838 = vmatprep.subr.mxu0 0.0
        %839 = vmatpush2.msra.mxu0 0.0
        %840 = vmatprep.subr.mxu0 0.0
        %841 = vmatpush2.msra.mxu0 0.0
        %842 = vmatprep.subr.mxu0 0.0
        %843 = vmatpush2.msra.mxu0 0.0
        %844 = vmatprep.subr.mxu0 0.0
        %845 = vmatpush2.msra.mxu0 0.0
        %846 = vmatprep.subr.mxu0 0.0
        %847 = vmatpush2.msra.mxu0 0.0
        %848 = vmatprep.subr.mxu0 0.0
        %849 = vmatpush2.msra.mxu0 0.0
        %850 = vmatprep.subr.mxu0 0.0
        %851 = vmatpush2.msra.mxu0 0.0
        %852 = vmatprep.subr.mxu0 0.0
        %853 = vmatpush2.msra.mxu0 0.0
        %854 = vmatprep.subr.mxu0 0.0
        %855 = vmatpush2.msra.mxu0 0.0
        %856 = vmatprep.subr.mxu0 0.0
        %857 = vmatpush2.msra.mxu0 0.0
        %858 = vmatprep.subr.mxu0 0.0
        %859 = vmatpush2.msra.mxu0 0.0
        %860 = vmatprep.subr.mxu0 0.0
        %861 = vmatpush2.msra.mxu0 0.0
        %862 = vmatprep.mubr.f32.mxu0 0.0
        %863 = vmatmul.mubr.f32.gmra.mxu0 %v796
        %v864 = vpop.f32.mrf.mxu0
        %v865 = vadd.f32 0.0, %v864
        %v866 = vpop.f32.mrf.mxu0
        %867 = vdwg.mxu0
        %v869 = vsel %vm368, %v756, 0
        %871 = vmatprep.subr.mxu0 0.0
        %872 = vmatpush1.msra.mxu0 0.0
        %873 = vmatprep.subr.mxu0 0.0
        %874 = vmatpush1.msra.mxu0 0.0
        %875 = vmatprep.subr.mxu0 0.0
        %876 = vmatpush1.msra.mxu0 0.0
        %877 = vmatprep.subr.mxu0 0.0
        %878 = vmatpush1.msra.mxu0 0.0
        %879 = vmatprep.subr.mxu0 0.0
        %880 = vmatpush1.msra.mxu0 0.0
        %881 = vmatprep.subr.mxu0 0.0
        %882 = vmatpush1.msra.mxu0 0.0
        %883 = vmatprep.subr.mxu0 0.0
        %884 = vmatpush1.msra.mxu0 0.0
        %885 = vmatprep.subr.mxu0 0.0
        %886 = vmatpush1.msra.mxu0 0.0
        %887 = vmatprep.subr.mxu0 0.0
        %888 = vmatpush1.msra.mxu0 0.0
        %889 = vmatprep.subr.mxu0 0.0
        %890 = vmatpush1.msra.mxu0 0.0
        %891 = vmatprep.subr.mxu0 0.0
        %892 = vmatpush1.msra.mxu0 0.0
        %893 = vmatprep.subr.mxu0 0.0
        %894 = vmatpush1.msra.mxu0 0.0
        %895 = vmatprep.subr.mxu0 0.0
        %896 = vmatpush1.msra.mxu0 %v776
        %897 = vmatprep.subr.mxu0 0.0
        %898 = vmatpush1.msra.mxu0 %v775
        %899 = vmatprep.subr.mxu0 0.0
        %900 = vmatpush1.msra.mxu0 %v774
        %901 = vmatprep.subr.mxu0 0.0
        %902 = vmatpush1.msra.mxu0 %v773
        %903 = vmatprep.subr.mxu0 0.0
        %904 = vmatpush2.msra.mxu0 0.0
        %905 = vmatprep.subr.mxu0 0.0
        %906 = vmatpush2.msra.mxu0 0.0
        %907 = vmatprep.subr.mxu0 0.0
        %908 = vmatpush2.msra.mxu0 0.0
        %909 = vmatprep.subr.mxu0 0.0
        %910 = vmatpush2.msra.mxu0 0.0
        %911 = vmatprep.subr.mxu0 0.0
        %912 = vmatpush2.msra.mxu0 0.0
        %913 = vmatprep.subr.mxu0 0.0
        %914 = vmatpush2.msra.mxu0 0.0
        %915 = vmatprep.subr.mxu0 0.0
        %916 = vmatpush2.msra.mxu0 0.0
        %917 = vmatprep.subr.mxu0 0.0
        %918 = vmatpush2.msra.mxu0 0.0
        %919 = vmatprep.subr.mxu0 0.0
        %920 = vmatpush2.msra.mxu0 0.0
        %921 = vmatprep.subr.mxu0 0.0
        %922 = vmatpush2.msra.mxu0 0.0
        %923 = vmatprep.subr.mxu0 0.0
        %924 = vmatpush2.msra.mxu0 0.0
        %925 = vmatprep.subr.mxu0 0.0
        %926 = vmatpush2.msra.mxu0 0.0
        %927 = vmatprep.subr.mxu0 0.0
        %928 = vmatpush2.msra.mxu0 0.0
        %929 = vmatprep.subr.mxu0 0.0
        %930 = vmatpush2.msra.mxu0 0.0
        %931 = vmatprep.subr.mxu0 0.0
        %932 = vmatpush2.msra.mxu0 0.0
        %933 = vmatprep.subr.mxu0 0.0
        %934 = vmatpush2.msra.mxu0 0.0
        %935 = vmatprep.mubr.f32.mxu0 0.0
        %936 = vmatmul.mubr.f32.gmra.mxu0 %v869
        %v937 = vpop.f32.mrf.mxu0
        %v938 = vadd.f32 %v865, %v937
        %v939 = vpop.f32.mrf.mxu0
        %940 = vdwg.mxu0
        %v941 = vld [vmem:[%s4] sm:$0x1]
        %v943 = vlaneseq
        %v944 = vshrl.u32 %v943, 7
        %v945 = vsub.s32 0, %v944
        %v946 = vrot.slane %v941, %v945
        %v948 = vadd.f32 %v938, %v946
        %vm949 = vcmask 130048
        %v950 = vsel %vm949, %v948, -inf
        %951 = vmax.xlane.f32.xlu0 %v950
        %v952 = vpop.xlane.xlu0 %951
        %v953 = vsub.f32 %v948, %v952
        %v954 = vmul.f32 %v953, 1.442695
        %v955 = vpow.pop %v954
        %v956 = vsel %vm949, %v955, 0.0
        %957 = vadd.xlane.f32.xlu0 %v956
        %v958 = vpop.xlane.xlu0 %957
        %v959 = vlog2.pop %v958
        %v960 = vmul.f32 %v959, 0.6931472
        %v961 = vsub.f32 %v953, %v960
        %962 = vst.msk [vmem:[%s255] sm:$0xff] %vm949, %v961
        %s963 = sand.u32 %s145, 1
        %s964 = scalar_lea.sflag [#allocation4], %s963
        %s965 = sand.u32 %s145, 1
        %s966 = smul.addr %s965, 8
        %s967 = scalar_lea.vmem [#allocation5], %s966
        // Predicated region
        $region45: #{tpu_custom_call.1} parent=39 // pred_check
          %p968 = pneg %p155
        $region46: #{tpu_custom_call.1} parent=39 // pred_check_branch
          %970 = sbr.rel (%p968) target = $region48
        $region47: #{tpu_custom_call.1} parent=39 // pred_region
          %s972 = ssub.s32 128, 128
          %973 = vsyncadd %s964, %s972
          %s974 = smul.addr %s22, 128
          %s975 = scalar_lea.hbm %s5, %s974
          %s977 = sshll.u32 %s967, 4
          %s978 = int_to_ptr.vmem [resolvable:$true] %s977
          %980 = dma.vmem_to_hbm [thread:$0]  %s978, 128, %s975, %s964
        $region48: #{tpu_custom_call.1} parent=39 // pred_fallthru
          _
      $region40: #{tpu_custom_call.1} parent=5 // pred_fallthru
        _
      %p981 = scmp.le.s32.totalorder 2, %s17
      // Predicated region
      $region49: #{tpu_custom_call.1} parent=5 // pred_check
        %p982 = pneg %p981
      $region50: #{tpu_custom_call.1} parent=5 // pred_check_branch
        %984 = sbr.rel (%p982) target = $region52
      $region51: #{tpu_custom_call.1} parent=5 // pred_region
        %s985 = ssub.s32 %s17, 2
        // Predicated region
        $region53: #{tpu_custom_call.1} parent=51 // pred_check
          %p986 = pneg %p161
        $region54: #{tpu_custom_call.1} parent=51 // pred_check_branch
          %988 = sbr.rel (%p986) target = $region56
        $region55: #{tpu_custom_call.1} parent=51 // pred_region
          %s989 = sand.u32 %s146, 1
          %s990 = scalar_lea.sflag [#allocation4], %s989
          %s991 = sand.u32 %s146, 1
          %s992 = smul.addr %s991, 8
          %s993 = scalar_lea.vmem [#allocation5], %s992
          %994 = dma.done %s990, 128
        $region56: #{tpu_custom_call.1} parent=51 // pred_fallthru
          _
      $region52: #{tpu_custom_call.1} parent=5 // pred_fallthru
        _
    $region6: #{tpu_custom_call.1} parent=1 // loop_footer
      %s21 = sadd.s32 1, %s17
    $region7: #{tpu_custom_call.1} parent=1 // loop_footer_branch
      %16 = sbr.rel target = $region3
    $region8: #{tpu_custom_call.1} parent=1 // loop_exit
      _
    %995 = vsyncpa [#allocation3], 1
    %s996 = scalar_lea.sflag [#allocation3], 1
    %997 = vsyncpa %s996, 1
    %998 = vsyncpa [#allocation4], 1
    %s999 = scalar_lea.sflag [#allocation4], 1
    %1000 = vsyncpa %s999, 1

</llo_original>
